<compile_context>
chip_gen: v7x
topology: tpu7x:2x2x1
jax: 0.10.0
libtpu: 0.0.40
codegen_flags: <defaults>
</compile_context>

<pallas_src>
import jax
import jax.numpy as jnp
from jax.experimental import pallas as pl
from jax.experimental.pallas import tpu as pltpu

N_TOKENS_L1 = 5          # tokens through neuron_l1
N_TOKENS_L2 = 4          # tokens through neuron_l2
N_TOKENS = N_TOKENS_L1 + N_TOKENS_L2          # 9
OUT_L1 = 16
OUT_L2 = 5
TOTAL_OUT = N_TOKENS_L1 * OUT_L1 + N_TOKENS_L2 * OUT_L2   # 100
OUT_PAD = 128            # lane-dense padded output width
MAX_TILE_B = 512


def _debedder_kernel(x_ref, w1_ref, w2_ref, b1_ref, b2_ref, o_ref):
    # x_ref : (tile_b, 9*d_model) f32 (or bf16)   -- one batch tile
    # w1_ref: (d_model, 16) bf16                  -- W1.T, VMEM-resident
    # w2_ref: (d_model, 5)  bf16                  -- W2.T, VMEM-resident
    # b1_ref: (1, 16) f32   b2_ref: (1, 5) f32
    # o_ref : (tile_b, 128) f32                   -- lanes [100:128] unused
    d_model = w1_ref.shape[0]
    w1 = w1_ref[...]
    w2 = w2_ref[...]
    b1 = b1_ref[...]
    b2 = b2_ref[...]

    # Tokens 0..4 -> neuron_l1, lanes [16*t : 16*t+16)
    for t in range(N_TOKENS_L1):
        xi = x_ref[:, t * d_model:(t + 1) * d_model].astype(jnp.bfloat16)
        y = jnp.dot(xi, w1, preferred_element_type=jnp.float32)
        o_ref[:, OUT_L1 * t:OUT_L1 * (t + 1)] = y + b1

    # Tokens 5..8 -> neuron_l2, lanes [80 + 5*j : 80 + 5*j + 5)
    base = N_TOKENS_L1 * OUT_L1
    for j in range(N_TOKENS_L2):
        t = N_TOKENS_L1 + j
        xi = x_ref[:, t * d_model:(t + 1) * d_model].astype(jnp.bfloat16)
        y = jnp.dot(xi, w2, preferred_element_type=jnp.float32)
        o_ref[:, base + OUT_L2 * j:base + OUT_L2 * (j + 1)] = y + b2


def pack_debedder_params(w1, b1, w2, b2, dtype=jnp.bfloat16):
    """Init-time packing (done ONCE, not per call).

    w1: (16, d_model), b1: (16,)   -- PyTorch nn.Linear convention y = x @ W.T + b
    w2: (5,  d_model), b2: (5,)
    Returns w1t (d_model,16) bf16, w2t (d_model,5) bf16, b1r (1,16) f32, b2r (1,5) f32.
    """
    w1t = jnp.asarray(w1).T.astype(dtype)
    w2t = jnp.asarray(w2).T.astype(dtype)
    b1r = jnp.asarray(b1, dtype=jnp.float32).reshape(1, OUT_L1)
    b2r = jnp.asarray(b2, dtype=jnp.float32).reshape(1, OUT_L2)
    return w1t, w2t, b1r, b2r


def _select_tiling(B, d_model):
    """Pick tile_b / grid / vmem limit from batch, d_model and device VMEM."""
    K = N_TOKENS * d_model
    try:
        vmem_cap = int(getattr(pltpu.get_tpu_info(), "vmem_capacity_bytes",
                               64 << 20))
    except Exception:  # pragma: no cover - conservative fallback (v7x per-core)
        vmem_cap = 64 << 20

    # Per-grid-step buffer budget: stay well inside the smallest per-core VMEM
    # (64 MiB on v7x) and under what we explicitly request via vmem_limit_bytes.
    budget = min(vmem_cap // 2, 28 << 20)
    per_row = 2 * K * 4 + 2 * OUT_PAD * 4          # double-buffered f32 x + f32 out
    fixed = 2 * 2 * d_model * (OUT_L1 + OUT_L2)    # bf16 weights (double-buffered)
    fixed += 2 * 4 * (OUT_L1 + OUT_L2)             # biases
    fixed += 2 << 20                               # headroom: bf16 cast temps, scratch
    cap_rows = (max(budget - fixed, 0) // per_row) // 16 * 16
    cap_rows = max(16, min(cap_rows, MAX_TILE_B))

    if B <= 16:
        # Full-extent batch block: always legal (block dims equal array dims).
        tile_b = B
    else:
        # Multiple of 16 (bf16 sublane packing), never larger than the array,
        # and >= 2 grid steps for B >= 32 so v7x megacore shards the batch.
        want = ((pl.cdiv(B, 2) + 15) // 16) * 16
        tile_b = max(16, min(cap_rows, want, (B // 16) * 16))
    grid_b = pl.cdiv(B, tile_b)

    # Explicit scoped-VMEM limit so the per-generation defaults never bind.
    vmem_limit = int(min(max(tile_b * per_row + fixed + (4 << 20), 32 << 20),
                         56 << 20))
    return tile_b, grid_b, vmem_limit


@jax.jit
def debedder_forward(x, w1t, w2t, b1r, b2r):
    """x: (B, S, d_model) with S >= 9; packed params from pack_debedder_params.
    Returns (B, 100) float32, matching the PyTorch module output order."""
    B, S, d_model = x.shape
    assert S >= N_TOKENS
    K = N_TOKENS * d_model

    # Free view when S == 9 (identity slice + contiguous reshape). No dtype
    # cast here: x is read once from HBM and downcast to bf16 inside the kernel.
    x_k = x[:, :N_TOKENS, :].reshape(B, K)

    tile_b, grid_b, vmem_limit = _select_tiling(B, d_model)

    cost = pl.CostEstimate(
        flops=2 * B * d_model * TOTAL_OUT,
        transcendentals=0,
        bytes_accessed=(B * K * x.dtype.itemsize
                        + d_model * (OUT_L1 + OUT_L2) * 2
                        + (OUT_L1 + OUT_L2) * 4
                        + B * OUT_PAD * 4),
    )

    out = pl.pallas_call(
        _debedder_kernel,
        out_shape=jax.ShapeDtypeStruct((B, OUT_PAD), jnp.float32),
        grid=(grid_b,),
        in_specs=[
            pl.BlockSpec((tile_b, K), lambda i: (i, 0)),
            pl.BlockSpec((d_model, OUT_L1), lambda i: (0, 0)),   # constant -> DMA once
            pl.BlockSpec((d_model, OUT_L2), lambda i: (0, 0)),
            pl.BlockSpec((1, OUT_L1), lambda i: (0, 0)),
            pl.BlockSpec((1, OUT_L2), lambda i: (0, 0)),
        ],
        out_specs=pl.BlockSpec((tile_b, OUT_PAD), lambda i: (i, 0)),
        compiler_params=pltpu.CompilerParams(
            dimension_semantics=("parallel",),
            vmem_limit_bytes=vmem_limit),
        cost_estimate=cost,
    )(x_k, w1t, w2t, b1r, b2r)

    return out[:, :TOTAL_OUT]


def debedder_reference(x, w1, b1, w2, b2):
    """Pure-JAX f32 reference matching the PyTorch module exactly."""
    xf = x.astype(jnp.float32)
    w1f, b1f = w1.astype(jnp.float32), b1.astype(jnp.float32)
    w2f, b2f = w2.astype(jnp.float32), b2.astype(jnp.float32)
    outs = []
    for i in range(N_TOKENS_L1):
        outs.append(xf[:, i, :] @ w1f.T + b1f)
    for i in range(N_TOKENS_L1, N_TOKENS):
        outs.append(xf[:, i, :] @ w2f.T + b2f)
    return jnp.concatenate(outs, axis=1)


if __name__ == "__main__":
    key = jax.random.PRNGKey(0)
    B, S, d_model = 2, 9, 128   # small shapes consistent with the forward pass

    key, kx = jax.random.split(key)
    x = jax.random.normal(kx, (B, S, d_model), dtype=jnp.float32)

    # Deterministic parameter init (PyTorch nn.Linear-like uniform bound).
    bound = 1.0 / (d_model ** 0.5)
    key, k1w, k1b, k2w, k2b = jax.random.split(key, 5)
    w1 = jax.random.uniform(k1w, (OUT_L1, d_model), jnp.float32, -bound, bound)
    b1 = jax.random.uniform(k1b, (OUT_L1,), jnp.float32, -bound, bound)
    w2 = jax.random.uniform(k2w, (OUT_L2, d_model), jnp.float32, -bound, bound)
    b2 = jax.random.uniform(k2b, (OUT_L2,), jnp.float32, -bound, bound)

    # Pack weights ONCE (init-time); the hot path is a single pallas_call.
    w1t, w2t, b1r, b2r = pack_debedder_params(w1, b1, w2, b2)
    w1t = jax.block_until_ready(w1t)

    # --- small batch (single full-extent block) ---
    out = jax.block_until_ready(debedder_forward(x, w1t, w2t, b1r, b2r))
    ref = debedder_reference(x, w1, b1, w2, b2)
    assert out.shape == (B, TOTAL_OUT), out.shape
    # bf16 in-kernel downcast vs f32 reference -> loosened tolerance.
    assert jnp.allclose(out, ref, atol=3e-2, rtol=3e-2), \
        float(jnp.max(jnp.abs(out - ref)))

    # --- larger ragged batch (multi-step grid + partial last block) ---
    B2 = 40
    key, kx2 = jax.random.split(key)
    x2 = jax.random.normal(kx2, (B2, S, d_model), dtype=jnp.float32)
    out2 = jax.block_until_ready(debedder_forward(x2, w1t, w2t, b1r, b2r))
    ref2 = debedder_reference(x2, w1, b1, w2, b2)
    assert out2.shape == (B2, TOTAL_OUT), out2.shape
    assert jnp.allclose(out2, ref2, atol=3e-2, rtol=3e-2), \
        float(jnp.max(jnp.abs(out2 - ref2)))

    print("KERNEL_OK")
</pallas_src>

<mosaic_0001>
module attributes {stable_mosaic.version = 11 : i64} {
  func.func @_debedder_kernel(%arg0: i32, %arg1: memref<2x1152xf32, #tpu.memory_space<vmem>>, %arg2: memref<128x16xbf16, #tpu.memory_space<vmem>>, %arg3: memref<128x5xbf16, #tpu.memory_space<vmem>>, %arg4: memref<1x16xf32, #tpu.memory_space<vmem>>, %arg5: memref<1x5xf32, #tpu.memory_space<vmem>>, %arg6: memref<2x128xf32, #tpu.memory_space<vmem>>) attributes {dimension_semantics = [#tpu.dimension_semantics<parallel>], iteration_bounds = array<i64: 1>, scalar_prefetch = 0 : i64, scratch_operands = 0 : i64, tpu.core_type = #tpu.core_type<tc>, window_params = [{transform_indices = @transform_0, window_bounds = array<i64: 2, 1152>}, {pipeline_mode = #tpu.pipeline_mode<synchronous>, transform_indices = @transform_1, window_bounds = array<i64: 128, 16>}, {pipeline_mode = #tpu.pipeline_mode<synchronous>, transform_indices = @transform_2, window_bounds = array<i64: 128, 5>}, {pipeline_mode = #tpu.pipeline_mode<synchronous>, transform_indices = @transform_3, window_bounds = array<i64: 1, 16>}, {pipeline_mode = #tpu.pipeline_mode<synchronous>, transform_indices = @transform_4, window_bounds = array<i64: 1, 5>}, {transform_indices = @transform_5, window_bounds = array<i64: 2, 128>}]} {
    %c0 = arith.constant 0 : index
    %c0_0 = arith.constant 0 : index
    %0 = vector.load %arg2[%c0, %c0_0] : memref<128x16xbf16, #tpu.memory_space<vmem>>, vector<128x16xbf16>
    %c0_1 = arith.constant 0 : index
    %c0_2 = arith.constant 0 : index
    %1 = vector.load %arg3[%c0_1, %c0_2] : memref<128x5xbf16, #tpu.memory_space<vmem>>, vector<128x5xbf16>
    %c0_3 = arith.constant 0 : index
    %c0_4 = arith.constant 0 : index
    %2 = vector.load %arg4[%c0_3, %c0_4] : memref<1x16xf32, #tpu.memory_space<vmem>>, vector<1x16xf32>
    %c0_5 = arith.constant 0 : index
    %c0_6 = arith.constant 0 : index
    %3 = vector.load %arg5[%c0_5, %c0_6] : memref<1x5xf32, #tpu.memory_space<vmem>>, vector<1x5xf32>
    %c0_7 = arith.constant 0 : index
    %c0_8 = arith.constant 0 : index
    %4 = vector.load %arg1[%c0_7, %c0_8] : memref<2x1152xf32, #tpu.memory_space<vmem>>, vector<2x128xf32>
    %5 = arith.truncf %4 : vector<2x128xf32> to vector<2x128xbf16>
    %cst = arith.constant dense<0.000000e+00> : vector<2x16xf32>
    %6 = tpu.matmul %5, %0, %cst {dimension_numbers = #tpu.dot_dimension_numbers<[1], [0], [0], [1], [0, 0, 1, 1], [], []>} : vector<2x128xbf16>, vector<128x16xbf16>, vector<2x16xf32> -> vector<2x16xf32>
    %7 = vector.broadcast %2 : vector<1x16xf32> to vector<2x16xf32>
    %8 = arith.addf %6, %7 : vector<2x16xf32>
    %c0_9 = arith.constant 0 : index
    %c0_10 = arith.constant 0 : index
    %9 = vector.load %arg6[%c0_9, %c0_10] : memref<2x128xf32, #tpu.memory_space<vmem>>, vector<2x16xf32>
    tpu.vector_store %arg6[%c0_9, %c0_10], %8 {strides = array<i32>} : memref<2x128xf32, #tpu.memory_space<vmem>>, vector<2x16xf32>,
    %c0_11 = arith.constant 0 : index
    %c128 = arith.constant 128 : index
    %10 = vector.load %arg1[%c0_11, %c128] : memref<2x1152xf32, #tpu.memory_space<vmem>>, vector<2x128xf32>
    %11 = arith.truncf %10 : vector<2x128xf32> to vector<2x128xbf16>
    %cst_12 = arith.constant dense<0.000000e+00> : vector<2x16xf32>
    %12 = tpu.matmul %11, %0, %cst_12 {dimension_numbers = #tpu.dot_dimension_numbers<[1], [0], [0], [1], [0, 0, 1, 1], [], []>} : vector<2x128xbf16>, vector<128x16xbf16>, vector<2x16xf32> -> vector<2x16xf32>
    %13 = vector.broadcast %2 : vector<1x16xf32> to vector<2x16xf32>
    %14 = arith.addf %12, %13 : vector<2x16xf32>
    %c0_13 = arith.constant 0 : index
    %c16 = arith.constant 16 : index
    %15 = vector.load %arg6[%c0_13, %c16] : memref<2x128xf32, #tpu.memory_space<vmem>>, vector<2x16xf32>
    tpu.vector_store %arg6[%c0_13, %c16], %14 {strides = array<i32>} : memref<2x128xf32, #tpu.memory_space<vmem>>, vector<2x16xf32>,
    %c0_14 = arith.constant 0 : index
    %c256 = arith.constant 256 : index
    %16 = vector.load %arg1[%c0_14, %c256] : memref<2x1152xf32, #tpu.memory_space<vmem>>, vector<2x128xf32>
    %17 = arith.truncf %16 : vector<2x128xf32> to vector<2x128xbf16>
    %cst_15 = arith.constant dense<0.000000e+00> : vector<2x16xf32>
    %18 = tpu.matmul %17, %0, %cst_15 {dimension_numbers = #tpu.dot_dimension_numbers<[1], [0], [0], [1], [0, 0, 1, 1], [], []>} : vector<2x128xbf16>, vector<128x16xbf16>, vector<2x16xf32> -> vector<2x16xf32>
    %19 = vector.broadcast %2 : vector<1x16xf32> to vector<2x16xf32>
    %20 = arith.addf %18, %19 : vector<2x16xf32>
    %c0_16 = arith.constant 0 : index
    %c32 = arith.constant 32 : index
    %21 = vector.load %arg6[%c0_16, %c32] : memref<2x128xf32, #tpu.memory_space<vmem>>, vector<2x16xf32>
    tpu.vector_store %arg6[%c0_16, %c32], %20 {strides = array<i32>} : memref<2x128xf32, #tpu.memory_space<vmem>>, vector<2x16xf32>,
    %c0_17 = arith.constant 0 : index
    %c384 = arith.constant 384 : index
    %22 = vector.load %arg1[%c0_17, %c384] : memref<2x1152xf32, #tpu.memory_space<vmem>>, vector<2x128xf32>
    %23 = arith.truncf %22 : vector<2x128xf32> to vector<2x128xbf16>
    %cst_18 = arith.constant dense<0.000000e+00> : vector<2x16xf32>
    %24 = tpu.matmul %23, %0, %cst_18 {dimension_numbers = #tpu.dot_dimension_numbers<[1], [0], [0], [1], [0, 0, 1, 1], [], []>} : vector<2x128xbf16>, vector<128x16xbf16>, vector<2x16xf32> -> vector<2x16xf32>
    %25 = vector.broadcast %2 : vector<1x16xf32> to vector<2x16xf32>
    %26 = arith.addf %24, %25 : vector<2x16xf32>
    %c0_19 = arith.constant 0 : index
    %c48 = arith.constant 48 : index
    %27 = vector.load %arg6[%c0_19, %c48] : memref<2x128xf32, #tpu.memory_space<vmem>>, vector<2x16xf32>
    tpu.vector_store %arg6[%c0_19, %c48], %26 {strides = array<i32>} : memref<2x128xf32, #tpu.memory_space<vmem>>, vector<2x16xf32>,
    %c0_20 = arith.constant 0 : index
    %c512 = arith.constant 512 : index
    %28 = vector.load %arg1[%c0_20, %c512] : memref<2x1152xf32, #tpu.memory_space<vmem>>, vector<2x128xf32>
    %29 = arith.truncf %28 : vector<2x128xf32> to vector<2x128xbf16>
    %cst_21 = arith.constant dense<0.000000e+00> : vector<2x16xf32>
    %30 = tpu.matmul %29, %0, %cst_21 {dimension_numbers = #tpu.dot_dimension_numbers<[1], [0], [0], [1], [0, 0, 1, 1], [], []>} : vector<2x128xbf16>, vector<128x16xbf16>, vector<2x16xf32> -> vector<2x16xf32>
    %31 = vector.broadcast %2 : vector<1x16xf32> to vector<2x16xf32>
    %32 = arith.addf %30, %31 : vector<2x16xf32>
    %c0_22 = arith.constant 0 : index
    %c64 = arith.constant 64 : index
    %33 = vector.load %arg6[%c0_22, %c64] : memref<2x128xf32, #tpu.memory_space<vmem>>, vector<2x16xf32>
    tpu.vector_store %arg6[%c0_22, %c64], %32 {strides = array<i32>} : memref<2x128xf32, #tpu.memory_space<vmem>>, vector<2x16xf32>,
    %c0_23 = arith.constant 0 : index
    %c640 = arith.constant 640 : index
    %34 = vector.load %arg1[%c0_23, %c640] : memref<2x1152xf32, #tpu.memory_space<vmem>>, vector<2x128xf32>
    %35 = arith.truncf %34 : vector<2x128xf32> to vector<2x128xbf16>
    %cst_24 = arith.constant dense<0.000000e+00> : vector<2x5xf32>
    %36 = tpu.matmul %35, %1, %cst_24 {dimension_numbers = #tpu.dot_dimension_numbers<[1], [0], [0], [1], [0, 0, 1, 1], [], []>} : vector<2x128xbf16>, vector<128x5xbf16>, vector<2x5xf32> -> vector<2x5xf32>
    %37 = vector.broadcast %3 : vector<1x5xf32> to vector<2x5xf32>
    %38 = arith.addf %36, %37 : vector<2x5xf32>
    %c0_25 = arith.constant 0 : index
    %c80 = arith.constant 80 : index
    %39 = vector.load %arg6[%c0_25, %c80] : memref<2x128xf32, #tpu.memory_space<vmem>>, vector<2x5xf32>
    tpu.vector_store %arg6[%c0_25, %c80], %38 {strides = array<i32>} : memref<2x128xf32, #tpu.memory_space<vmem>>, vector<2x5xf32>,
    %c0_26 = arith.constant 0 : index
    %c768 = arith.constant 768 : index
    %40 = vector.load %arg1[%c0_26, %c768] : memref<2x1152xf32, #tpu.memory_space<vmem>>, vector<2x128xf32>
    %41 = arith.truncf %40 : vector<2x128xf32> to vector<2x128xbf16>
    %cst_27 = arith.constant dense<0.000000e+00> : vector<2x5xf32>
    %42 = tpu.matmul %41, %1, %cst_27 {dimension_numbers = #tpu.dot_dimension_numbers<[1], [0], [0], [1], [0, 0, 1, 1], [], []>} : vector<2x128xbf16>, vector<128x5xbf16>, vector<2x5xf32> -> vector<2x5xf32>
    %43 = vector.broadcast %3 : vector<1x5xf32> to vector<2x5xf32>
    %44 = arith.addf %42, %43 : vector<2x5xf32>
    %c0_28 = arith.constant 0 : index
    %c85 = arith.constant 85 : index
    %45 = vector.load %arg6[%c0_28, %c85] : memref<2x128xf32, #tpu.memory_space<vmem>>, vector<2x5xf32>
    tpu.vector_store %arg6[%c0_28, %c85], %44 {strides = array<i32>} : memref<2x128xf32, #tpu.memory_space<vmem>>, vector<2x5xf32>,
    %c0_29 = arith.constant 0 : index
    %c896 = arith.constant 896 : index
    %46 = vector.load %arg1[%c0_29, %c896] : memref<2x1152xf32, #tpu.memory_space<vmem>>, vector<2x128xf32>
    %47 = arith.truncf %46 : vector<2x128xf32> to vector<2x128xbf16>
    %cst_30 = arith.constant dense<0.000000e+00> : vector<2x5xf32>
    %48 = tpu.matmul %47, %1, %cst_30 {dimension_numbers = #tpu.dot_dimension_numbers<[1], [0], [0], [1], [0, 0, 1, 1], [], []>} : vector<2x128xbf16>, vector<128x5xbf16>, vector<2x5xf32> -> vector<2x5xf32>
    %49 = vector.broadcast %3 : vector<1x5xf32> to vector<2x5xf32>
    %50 = arith.addf %48, %49 : vector<2x5xf32>
    %c0_31 = arith.constant 0 : index
    %c90 = arith.constant 90 : index
    %51 = vector.load %arg6[%c0_31, %c90] : memref<2x128xf32, #tpu.memory_space<vmem>>, vector<2x5xf32>
    tpu.vector_store %arg6[%c0_31, %c90], %50 {strides = array<i32>} : memref<2x128xf32, #tpu.memory_space<vmem>>, vector<2x5xf32>,
    %c0_32 = arith.constant 0 : index
    %c1024 = arith.constant 1024 : index
    %52 = vector.load %arg1[%c0_32, %c1024] : memref<2x1152xf32, #tpu.memory_space<vmem>>, vector<2x128xf32>
    %53 = arith.truncf %52 : vector<2x128xf32> to vector<2x128xbf16>
    %cst_33 = arith.constant dense<0.000000e+00> : vector<2x5xf32>
    %54 = tpu.matmul %53, %1, %cst_33 {dimension_numbers = #tpu.dot_dimension_numbers<[1], [0], [0], [1], [0, 0, 1, 1], [], []>} : vector<2x128xbf16>, vector<128x5xbf16>, vector<2x5xf32> -> vector<2x5xf32>
    %55 = vector.broadcast %3 : vector<1x5xf32> to vector<2x5xf32>
    %56 = arith.addf %54, %55 : vector<2x5xf32>
    %c0_34 = arith.constant 0 : index
    %c95 = arith.constant 95 : index
    %57 = vector.load %arg6[%c0_34, %c95] : memref<2x128xf32, #tpu.memory_space<vmem>>, vector<2x5xf32>
    tpu.vector_store %arg6[%c0_34, %c95], %56 {strides = array<i32>} : memref<2x128xf32, #tpu.memory_space<vmem>>, vector<2x5xf32>,
    return
  }
  func.func @transform_0(%arg0: i32) -> (i32, i32) {
    %c0_i32 = arith.constant 0 : i32
    %c0_i32_0 = arith.constant 0 : i32
    return %arg0, %c0_i32 : i32, i32
  }
  func.func @transform_1(%arg0: i32) -> (i32, i32) {
    %c0_i32 = arith.constant 0 : i32
    %c0_i32_0 = arith.constant 0 : i32
    %c0_i32_1 = arith.constant 0 : i32
    return %c0_i32, %c0_i32_0 : i32, i32
  }
  func.func @transform_2(%arg0: i32) -> (i32, i32) {
    %c0_i32 = arith.constant 0 : i32
    %c0_i32_0 = arith.constant 0 : i32
    %c0_i32_1 = arith.constant 0 : i32
    return %c0_i32, %c0_i32_0 : i32, i32
  }
  func.func @transform_3(%arg0: i32) -> (i32, i32) {
    %c0_i32 = arith.constant 0 : i32
    %c0_i32_0 = arith.constant 0 : i32
    %c0_i32_1 = arith.constant 0 : i32
    return %c0_i32, %c0_i32_0 : i32, i32
  }
  func.func @transform_4(%arg0: i32) -> (i32, i32) {
    %c0_i32 = arith.constant 0 : i32
    %c0_i32_0 = arith.constant 0 : i32
    %c0_i32_1 = arith.constant 0 : i32
    return %c0_i32, %c0_i32_0 : i32, i32
  }
  func.func @transform_5(%arg0: i32) -> (i32, i32) {
    %c0_i32 = arith.constant 0 : i32
    %c0_i32_0 = arith.constant 0 : i32
    return %arg0, %c0_i32 : i32, i32
  }
}

</mosaic_0001>

<llo_original>
// kernel: debedder_forward.1
$region0: #{debedder_forward.1}
  #allocation0 [shape = 'u32[]', space=smem, size = 0x4, offset = 0x4, fixed_abs, tag = 'smem constant byte address 0x4 - core index']
  #allocation1 [shape = 'u32[144,128]{1,0:T(1,128)}', space=vmem, size = 0x12000, scoped, tag = 'internal scratch']
  %s0 = inlined_call_operand.vmem [shape: f32[2,1152], index: 0, kind: input, shape index: {}]
  %s1 = inlined_call_operand.vmem [shape: bf16[128,16], index: 1, kind: input, shape index: {}]
  %s2 = inlined_call_operand.vmem [shape: bf16[128,5], index: 2, kind: input, shape index: {}]
  %s3 = inlined_call_operand.vmem [shape: f32[1,16], index: 3, kind: input, shape index: {}]
  %s4 = inlined_call_operand.vmem [shape: f32[1,5], index: 4, kind: input, shape index: {}]
  %s5 = inlined_call_operand.hbm [shape: f32[2,128], index: 5, kind: output, shape index: {}]
  %s6 = sld [smem:[#allocation0]]
  $region30: #{debedder_forward.1} parent=0
    _
  %s8 = ssub.s32 1, %s6
  %s9 = scalar_select 0, %s8, %s6
  $region1: #{debedder_forward.1} parent=0
    #allocation2 [shape = 'u8[1024]{0}', space=vmem, size = 0x400, scoped, tag = 'output window, operand 0, single buffered']
    #allocation3 [shape = 's32[1]{0}', space=sflag, size = 0x4, scoped, tag = 'scoped memory for debedder_forward.1']
    %10 = vsyncpa [#allocation3], 0
    // Predicated region
    $region2: #{debedder_forward.1} parent=1 // pred_check
      _
    $region3: #{debedder_forward.1} parent=1 // pred_check_branch
      %12 = sbr.rel (0) target = $region5
    $region4: #{debedder_forward.1} parent=1 // pred_region
      _
    $region5: #{debedder_forward.1} parent=1 // pred_fallthru
      _
    // Predicated region
    $region6: #{debedder_forward.1} parent=1 // pred_check
      _
    $region7: #{debedder_forward.1} parent=1 // pred_check_branch
      %14 = sbr.rel (0) target = $region9
    $region8: #{debedder_forward.1} parent=1 // pred_region
      _
    $region9: #{debedder_forward.1} parent=1 // pred_fallthru
      _
    // Predicated region
    $region10: #{debedder_forward.1} parent=1 // pred_check
      _
    $region11: #{debedder_forward.1} parent=1 // pred_check_branch
      %16 = sbr.rel (0) target = $region13
    $region12: #{debedder_forward.1} parent=1 // pred_region
      _
    $region13: #{debedder_forward.1} parent=1 // pred_fallthru
      _
    // Predicated region
    $region14: #{debedder_forward.1} parent=1 // pred_check
      _
    $region15: #{debedder_forward.1} parent=1 // pred_check_branch
      %18 = sbr.rel (0) target = $region17
    $region16: #{debedder_forward.1} parent=1 // pred_region
      _
    $region17: #{debedder_forward.1} parent=1 // pred_fallthru
      _
    // Predicated region
    $region18: #{debedder_forward.1} parent=1 // pred_check
      _
    $region19: #{debedder_forward.1} parent=1 // pred_check_branch
      %20 = sbr.rel (0) target = $region21
    $region20: #{debedder_forward.1} parent=1 // pred_region
      _
    $region21: #{debedder_forward.1} parent=1 // pred_fallthru
      _
    %v22 = vld [vmem:[%s1] sm:$0xf]
    %v23 = vld [vmem:[%s1 + $0x4] sm:$0xf]
    %v24 = vld [vmem:[%s1 + $0x8] sm:$0xf]
    %v25 = vld [vmem:[%s1 + $0xc] sm:$0xf]
    %v26 = vld [vmem:[%s1 + $0x10] sm:$0xf]
    %v27 = vld [vmem:[%s1 + $0x14] sm:$0xf]
    %v28 = vld [vmem:[%s1 + $0x18] sm:$0xf]
    %v29 = vld [vmem:[%s1 + $0x1c] sm:$0xf]
    %v30 = vld [vmem:[%s1 + $0x20] sm:$0xf]
    %v31 = vld [vmem:[%s1 + $0x24] sm:$0xf]
    %v32 = vld [vmem:[%s1 + $0x28] sm:$0xf]
    %v33 = vld [vmem:[%s1 + $0x2c] sm:$0xf]
    %v34 = vld [vmem:[%s1 + $0x30] sm:$0xf]
    %v35 = vld [vmem:[%s1 + $0x34] sm:$0xf]
    %v36 = vld [vmem:[%s1 + $0x38] sm:$0xf]
    %v37 = vld [vmem:[%s1 + $0x3c] sm:$0xf]
    %v38 = vld [vmem:[%s2] sm:$0xf]
    %v39 = vld [vmem:[%s2 + $0x4] sm:$0xf]
    %v40 = vld [vmem:[%s2 + $0x8] sm:$0xf]
    %v41 = vld [vmem:[%s2 + $0xc] sm:$0xf]
    %v42 = vld [vmem:[%s2 + $0x10] sm:$0xf]
    %v43 = vld [vmem:[%s2 + $0x14] sm:$0xf]
    %v44 = vld [vmem:[%s2 + $0x18] sm:$0xf]
    %v45 = vld [vmem:[%s2 + $0x1c] sm:$0xf]
    %v46 = vld [vmem:[%s2 + $0x20] sm:$0xf]
    %v47 = vld [vmem:[%s2 + $0x24] sm:$0xf]
    %v48 = vld [vmem:[%s2 + $0x28] sm:$0xf]
    %v49 = vld [vmem:[%s2 + $0x2c] sm:$0xf]
    %v50 = vld [vmem:[%s2 + $0x30] sm:$0xf]
    %v51 = vld [vmem:[%s2 + $0x34] sm:$0xf]
    %v52 = vld [vmem:[%s2 + $0x38] sm:$0xf]
    %v53 = vld [vmem:[%s2 + $0x3c] sm:$0xf]
    %v54 = vld [vmem:[%s3] sm:$0x1]
    %v55 = vld [vmem:[%s4] sm:$0x1]
    %v56 = vld [vmem:[%s0] sm:$0x3]
    %v57 = vpack.c.bf16 %v56, %v56
    %v59 = vlaneseq
    %v60 = vshrl.u32 %v59, 7
    %v61 = vsub.s32 0, %v60
    %v62 = vrot.slane %v54, %v61
    %v80 = vunpack.c.l.b16 %v22
    %v81 = vunpack.c.l.b16 %v23
    %v82 = vunpack.c.l.b16 %v24
    %v83 = vunpack.c.l.b16 %v25
    %v84 = vunpack.c.l.b16 %v26
    %v85 = vunpack.c.l.b16 %v27
    %v86 = vunpack.c.l.b16 %v28
    %v87 = vunpack.c.l.b16 %v29
    %v88 = vunpack.c.l.b16 %v30
    %v89 = vunpack.c.l.b16 %v31
    %v90 = vunpack.c.l.b16 %v32
    %v91 = vunpack.c.l.b16 %v33
    %v92 = vunpack.c.l.b16 %v34
    %v93 = vunpack.c.l.b16 %v35
    %v94 = vunpack.c.l.b16 %v36
    %v95 = vunpack.c.l.b16 %v37
    %v96 = vpack.c.b16 %v81, %v80
    %v97 = vpack.c.b16 %v83, %v82
    %v98 = vpack.c.b16 %v85, %v84
    %v99 = vpack.c.b16 %v87, %v86
    %v100 = vpack.c.b16 %v89, %v88
    %v101 = vpack.c.b16 %v91, %v90
    %v102 = vpack.c.b16 %v93, %v92
    %v103 = vpack.c.b16 %v95, %v94
    %112 = vmatprep.subr.bf16.mxu0 0
    %113 = vmatpush1.bf16.msra.mxu0 %v96
    %114 = vmatprep.subr.bf16.mxu0 0
    %115 = vmatpush1.bf16.msra.mxu0 %v97
    %116 = vmatprep.subr.bf16.mxu0 0
    %117 = vmatpush1.bf16.msra.mxu0 %v98
    %118 = vmatprep.subr.bf16.mxu0 0
    %119 = vmatpush1.bf16.msra.mxu0 %v99
    %120 = vmatprep.subr.bf16.mxu0 0
    %121 = vmatpush1.bf16.msra.mxu0 %v100
    %122 = vmatprep.subr.bf16.mxu0 0
    %123 = vmatpush1.bf16.msra.mxu0 %v101
    %124 = vmatprep.subr.bf16.mxu0 0
    %125 = vmatpush1.bf16.msra.mxu0 %v102
    %126 = vmatprep.subr.bf16.mxu0 0
    %127 = vmatpush1.bf16.msra.mxu0 %v103
    %128 = vmatprep.subr.bf16.mxu0 0
    %129 = vmatpush1.bf16.msra.mxu0 0
    %130 = vmatprep.subr.bf16.mxu0 0
    %131 = vmatpush1.bf16.msra.mxu0 0
    %132 = vmatprep.subr.bf16.mxu0 0
    %133 = vmatpush1.bf16.msra.mxu0 0
    %134 = vmatprep.subr.bf16.mxu0 0
    %135 = vmatpush1.bf16.msra.mxu0 0
    %136 = vmatprep.subr.bf16.mxu0 0
    %137 = vmatpush1.bf16.msra.mxu0 0
    %138 = vmatprep.subr.bf16.mxu0 0
    %139 = vmatpush1.bf16.msra.mxu0 0
    %140 = vmatprep.subr.bf16.mxu0 0
    %141 = vmatpush1.bf16.msra.mxu0 0
    %142 = vmatprep.subr.bf16.mxu0 0
    %143 = vmatpush1.bf16.msra.mxu0 0
    %144 = vmatprep.mubr.bf16.mxu0 0
    %145 = vmatmul.mubr.bf16.gmra.mrb[0].mxu0 %v57
    %v146 = vpop.f32.mrb[0].mxu0
    %v147 = vadd.f32 %v62, %v146
    %v148 = vpop.f32.mrb[0].mxu0
    %v149 = vpop.f32.mrb[0].mxu0
    %v150 = vpop.f32.mrb[0].mxu0
    %151 = vdwg.mxu0
    %vm152 = vcmask 123904
    %153 = vst.msk [vmem:[#allocation2] sm:$0x3] %vm152, %v147
    %v154 = vld [vmem:[%s0 + $0x2] sm:$0x3]
    %v155 = vpack.c.bf16 %v154, %v154
    %156 = vmatprep.subr.bf16.mxu0 0
    %157 = vmatpush1.bf16.msra.mxu0 %v96
    %158 = vmatprep.subr.bf16.mxu0 0
    %159 = vmatpush1.bf16.msra.mxu0 %v97
    %160 = vmatprep.subr.bf16.mxu0 0
    %161 = vmatpush1.bf16.msra.mxu0 %v98
    %162 = vmatprep.subr.bf16.mxu0 0
    %163 = vmatpush1.bf16.msra.mxu0 %v99
    %164 = vmatprep.subr.bf16.mxu0 0
    %165 = vmatpush1.bf16.msra.mxu0 %v100
    %166 = vmatprep.subr.bf16.mxu0 0
    %167 = vmatpush1.bf16.msra.mxu0 %v101
    %168 = vmatprep.subr.bf16.mxu0 0
    %169 = vmatpush1.bf16.msra.mxu0 %v102
    %170 = vmatprep.subr.bf16.mxu0 0
    %171 = vmatpush1.bf16.msra.mxu0 %v103
    %172 = vmatprep.subr.bf16.mxu0 0
    %173 = vmatpush1.bf16.msra.mxu0 0
    %174 = vmatprep.subr.bf16.mxu0 0
    %175 = vmatpush1.bf16.msra.mxu0 0
    %176 = vmatprep.subr.bf16.mxu0 0
    %177 = vmatpush1.bf16.msra.mxu0 0
    %178 = vmatprep.subr.bf16.mxu0 0
    %179 = vmatpush1.bf16.msra.mxu0 0
    %180 = vmatprep.subr.bf16.mxu0 0
    %181 = vmatpush1.bf16.msra.mxu0 0
    %182 = vmatprep.subr.bf16.mxu0 0
    %183 = vmatpush1.bf16.msra.mxu0 0
    %184 = vmatprep.subr.bf16.mxu0 0
    %185 = vmatpush1.bf16.msra.mxu0 0
    %186 = vmatprep.subr.bf16.mxu0 0
    %187 = vmatpush1.bf16.msra.mxu0 0
    %188 = vmatprep.mubr.bf16.mxu0 0
    %189 = vmatmul.mubr.bf16.gmra.mrb[0].mxu0 %v155
    %v190 = vpop.f32.mrb[0].mxu0
    %v191 = vadd.f32 %v62, %v190
    %v192 = vpop.f32.mrb[0].mxu0
    %v193 = vpop.f32.mrb[0].mxu0
    %v194 = vpop.f32.mrb[0].mxu0
    %195 = vdwg.mxu0
    %197 = vrot.lane.b32.xlu0 %v191, 16
    %v198 = vpop.permute.xlu0 %197
    %vm200 = vcmask 255104
    %201 = vst.msk [vmem:[#allocation2] sm:$0x3] %vm200, %v198
    %v202 = vld [vmem:[%s0 + $0x4] sm:$0x3]
    %v203 = vpack.c.bf16 %v202, %v202
    %204 = vmatprep.subr.bf16.mxu0 0
    %205 = vmatpush1.bf16.msra.mxu0 %v96
    %206 = vmatprep.subr.bf16.mxu0 0
    %207 = vmatpush1.bf16.msra.mxu0 %v97
    %208 = vmatprep.subr.bf16.mxu0 0
    %209 = vmatpush1.bf16.msra.mxu0 %v98
    %210 = vmatprep.subr.bf16.mxu0 0
    %211 = vmatpush1.bf16.msra.mxu0 %v99
    %212 = vmatprep.subr.bf16.mxu0 0
    %213 = vmatpush1.bf16.msra.mxu0 %v100
    %214 = vmatprep.subr.bf16.mxu0 0
    %215 = vmatpush1.bf16.msra.mxu0 %v101
    %216 = vmatprep.subr.bf16.mxu0 0
    %217 = vmatpush1.bf16.msra.mxu0 %v102
    %218 = vmatprep.subr.bf16.mxu0 0
    %219 = vmatpush1.bf16.msra.mxu0 %v103
    %220 = vmatprep.subr.bf16.mxu0 0
    %221 = vmatpush1.bf16.msra.mxu0 0
    %222 = vmatprep.subr.bf16.mxu0 0
    %223 = vmatpush1.bf16.msra.mxu0 0
    %224 = vmatprep.subr.bf16.mxu0 0
    %225 = vmatpush1.bf16.msra.mxu0 0
    %226 = vmatprep.subr.bf16.mxu0 0
    %227 = vmatpush1.bf16.msra.mxu0 0
    %228 = vmatprep.subr.bf16.mxu0 0
    %229 = vmatpush1.bf16.msra.mxu0 0
    %230 = vmatprep.subr.bf16.mxu0 0
    %231 = vmatpush1.bf16.msra.mxu0 0
    %232 = vmatprep.subr.bf16.mxu0 0
    %233 = vmatpush1.bf16.msra.mxu0 0
    %234 = vmatprep.subr.bf16.mxu0 0
    %235 = vmatpush1.bf16.msra.mxu0 0
    %236 = vmatprep.mubr.bf16.mxu0 0
    %237 = vmatmul.mubr.bf16.gmra.mrb[0].mxu0 %v203
    %v238 = vpop.f32.mrb[0].mxu0
    %v239 = vadd.f32 %v62, %v238
    %v240 = vpop.f32.mrb[0].mxu0
    %v241 = vpop.f32.mrb[0].mxu0
    %v242 = vpop.f32.mrb[0].mxu0
    %243 = vdwg.mxu0
    %245 = vrot.lane.b32.xlu0 %v239, 32
    %v246 = vpop.permute.xlu0 %245
    %vm248 = vcmask 386304
    %249 = vst.msk [vmem:[#allocation2] sm:$0x3] %vm248, %v246
    %v250 = vld [vmem:[%s0 + $0x6] sm:$0x3]
    %v251 = vpack.c.bf16 %v250, %v250
    %252 = vmatprep.subr.bf16.mxu0 0
    %253 = vmatpush1.bf16.msra.mxu0 %v96
    %254 = vmatprep.subr.bf16.mxu0 0
    %255 = vmatpush1.bf16.msra.mxu0 %v97
    %256 = vmatprep.subr.bf16.mxu0 0
    %257 = vmatpush1.bf16.msra.mxu0 %v98
    %258 = vmatprep.subr.bf16.mxu0 0
    %259 = vmatpush1.bf16.msra.mxu0 %v99
    %260 = vmatprep.subr.bf16.mxu0 0
    %261 = vmatpush1.bf16.msra.mxu0 %v100
    %262 = vmatprep.subr.bf16.mxu0 0
    %263 = vmatpush1.bf16.msra.mxu0 %v101
    %264 = vmatprep.subr.bf16.mxu0 0
    %265 = vmatpush1.bf16.msra.mxu0 %v102
    %266 = vmatprep.subr.bf16.mxu0 0
    %267 = vmatpush1.bf16.msra.mxu0 %v103
    %268 = vmatprep.subr.bf16.mxu0 0
    %269 = vmatpush1.bf16.msra.mxu0 0
    %270 = vmatprep.subr.bf16.mxu0 0
    %271 = vmatpush1.bf16.msra.mxu0 0
    %272 = vmatprep.subr.bf16.mxu0 0
    %273 = vmatpush1.bf16.msra.mxu0 0
    %274 = vmatprep.subr.bf16.mxu0 0
    %275 = vmatpush1.bf16.msra.mxu0 0
    %276 = vmatprep.subr.bf16.mxu0 0
    %277 = vmatpush1.bf16.msra.mxu0 0
    %278 = vmatprep.subr.bf16.mxu0 0
    %279 = vmatpush1.bf16.msra.mxu0 0
    %280 = vmatprep.subr.bf16.mxu0 0
    %281 = vmatpush1.bf16.msra.mxu0 0
    %282 = vmatprep.subr.bf16.mxu0 0
    %283 = vmatpush1.bf16.msra.mxu0 0
    %284 = vmatprep.mubr.bf16.mxu0 0
    %285 = vmatmul.mubr.bf16.gmra.mrb[0].mxu0 %v251
    %v286 = vpop.f32.mrb[0].mxu0
    %v287 = vadd.f32 %v62, %v286
    %v288 = vpop.f32.mrb[0].mxu0
    %v289 = vpop.f32.mrb[0].mxu0
    %v290 = vpop.f32.mrb[0].mxu0
    %291 = vdwg.mxu0
    %293 = vrot.lane.b32.xlu0 %v287, 48
    %v294 = vpop.permute.xlu0 %293
    %vm296 = vcmask 517504
    %297 = vst.msk [vmem:[#allocation2] sm:$0x3] %vm296, %v294
    %v298 = vld [vmem:[%s0 + $0x8] sm:$0x3]
    %v299 = vpack.c.bf16 %v298, %v298
    %300 = vmatprep.subr.bf16.mxu0 0
    %301 = vmatpush1.bf16.msra.mxu0 %v96
    %302 = vmatprep.subr.bf16.mxu0 0
    %303 = vmatpush1.bf16.msra.mxu0 %v97
    %304 = vmatprep.subr.bf16.mxu0 0
    %305 = vmatpush1.bf16.msra.mxu0 %v98
    %306 = vmatprep.subr.bf16.mxu0 0
    %307 = vmatpush1.bf16.msra.mxu0 %v99
    %308 = vmatprep.subr.bf16.mxu0 0
    %309 = vmatpush1.bf16.msra.mxu0 %v100
    %310 = vmatprep.subr.bf16.mxu0 0
    %311 = vmatpush1.bf16.msra.mxu0 %v101
    %312 = vmatprep.subr.bf16.mxu0 0
    %313 = vmatpush1.bf16.msra.mxu0 %v102
    %314 = vmatprep.subr.bf16.mxu0 0
    %315 = vmatpush1.bf16.msra.mxu0 %v103
    %316 = vmatprep.subr.bf16.mxu0 0
    %317 = vmatpush1.bf16.msra.mxu0 0
    %318 = vmatprep.subr.bf16.mxu0 0
    %319 = vmatpush1.bf16.msra.mxu0 0
    %320 = vmatprep.subr.bf16.mxu0 0
    %321 = vmatpush1.bf16.msra.mxu0 0
    %322 = vmatprep.subr.bf16.mxu0 0
    %323 = vmatpush1.bf16.msra.mxu0 0
    %324 = vmatprep.subr.bf16.mxu0 0
    %325 = vmatpush1.bf16.msra.mxu0 0
    %326 = vmatprep.subr.bf16.mxu0 0
    %327 = vmatpush1.bf16.msra.mxu0 0
    %328 = vmatprep.subr.bf16.mxu0 0
    %329 = vmatpush1.bf16.msra.mxu0 0
    %330 = vmatprep.subr.bf16.mxu0 0
    %331 = vmatpush1.bf16.msra.mxu0 0
    %332 = vmatprep.mubr.bf16.mxu0 0
    %333 = vmatmul.mubr.bf16.gmra.mrb[0].mxu0 %v299
    %v334 = vpop.f32.mrb[0].mxu0
    %v335 = vadd.f32 %v62, %v334
    %v336 = vpop.f32.mrb[0].mxu0
    %v337 = vpop.f32.mrb[0].mxu0
    %v338 = vpop.f32.mrb[0].mxu0
    %339 = vdwg.mxu0
    %341 = vrot.lane.b32.xlu0 %v335, 64
    %v342 = vpop.permute.xlu0 %341
    %vm344 = vcmask 648704
    %345 = vst.msk [vmem:[#allocation2] sm:$0x3] %vm344, %v342
    %v346 = vld [vmem:[%s0 + $0xa] sm:$0x3]
    %v347 = vpack.c.bf16 %v346, %v346
    %v349 = vlaneseq
    %v350 = vshrl.u32 %v349, 7
    %v351 = vsub.s32 0, %v350
    %v352 = vrot.slane %v55, %v351
    %v370 = vunpack.c.l.b16 %v38
    %v371 = vunpack.c.l.b16 %v39
    %v372 = vunpack.c.l.b16 %v40
    %v373 = vunpack.c.l.b16 %v41
    %v374 = vunpack.c.l.b16 %v42
    %v375 = vunpack.c.l.b16 %v43
    %v376 = vunpack.c.l.b16 %v44
    %v377 = vunpack.c.l.b16 %v45
    %v378 = vunpack.c.l.b16 %v46
    %v379 = vunpack.c.l.b16 %v47
    %v380 = vunpack.c.l.b16 %v48
    %v381 = vunpack.c.l.b16 %v49
    %v382 = vunpack.c.l.b16 %v50
    %v383 = vunpack.c.l.b16 %v51
    %v384 = vunpack.c.l.b16 %v52
    %v385 = vunpack.c.l.b16 %v53
    %v386 = vpack.c.b16 %v371, %v370
    %v387 = vpack.c.b16 %v373, %v372
    %v388 = vpack.c.b16 %v375, %v374
    %v389 = vpack.c.b16 %v377, %v376
    %v390 = vpack.c.b16 %v379, %v378
    %v391 = vpack.c.b16 %v381, %v380
    %v392 = vpack.c.b16 %v383, %v382
    %v393 = vpack.c.b16 %v385, %v384
    %402 = vmatprep.subr.bf16.mxu0 0
    %403 = vmatpush1.bf16.msra.mxu0 %v386
    %404 = vmatprep.subr.bf16.mxu0 0
    %405 = vmatpush1.bf16.msra.mxu0 %v387
    %406 = vmatprep.subr.bf16.mxu0 0
    %407 = vmatpush1.bf16.msra.mxu0 %v388
    %408 = vmatprep.subr.bf16.mxu0 0
    %409 = vmatpush1.bf16.msra.mxu0 %v389
    %410 = vmatprep.subr.bf16.mxu0 0
    %411 = vmatpush1.bf16.msra.mxu0 %v390
    %412 = vmatprep.subr.bf16.mxu0 0
    %413 = vmatpush1.bf16.msra.mxu0 %v391
    %414 = vmatprep.subr.bf16.mxu0 0
    %415 = vmatpush1.bf16.msra.mxu0 %v392
    %416 = vmatprep.subr.bf16.mxu0 0
    %417 = vmatpush1.bf16.msra.mxu0 %v393
    %418 = vmatprep.subr.bf16.mxu0 0
    %419 = vmatpush1.bf16.msra.mxu0 0
    %420 = vmatprep.subr.bf16.mxu0 0
    %421 = vmatpush1.bf16.msra.mxu0 0
    %422 = vmatprep.subr.bf16.mxu0 0
    %423 = vmatpush1.bf16.msra.mxu0 0
    %424 = vmatprep.subr.bf16.mxu0 0
    %425 = vmatpush1.bf16.msra.mxu0 0
    %426 = vmatprep.subr.bf16.mxu0 0
    %427 = vmatpush1.bf16.msra.mxu0 0
    %428 = vmatprep.subr.bf16.mxu0 0
    %429 = vmatpush1.bf16.msra.mxu0 0
    %430 = vmatprep.subr.bf16.mxu0 0
    %431 = vmatpush1.bf16.msra.mxu0 0
    %432 = vmatprep.subr.bf16.mxu0 0
    %433 = vmatpush1.bf16.msra.mxu0 0
    %434 = vmatprep.mubr.bf16.mxu0 0
    %435 = vmatmul.mubr.bf16.gmra.mrb[0].mxu0 %v347
    %v436 = vpop.f32.mrb[0].mxu0
    %v437 = vadd.f32 %v352, %v436
    %v438 = vpop.f32.mrb[0].mxu0
    %v439 = vpop.f32.mrb[0].mxu0
    %v440 = vpop.f32.mrb[0].mxu0
    %441 = vdwg.mxu0
    %443 = vrot.lane.b32.xlu0 %v437, 80
    %v444 = vpop.permute.xlu0 %443
    %vm446 = vcmask 689792
    %447 = vst.msk [vmem:[#allocation2] sm:$0x3] %vm446, %v444
    %v448 = vld [vmem:[%s0 + $0xc] sm:$0x3]
    %v449 = vpack.c.bf16 %v448, %v448
    %450 = vmatprep.subr.bf16.mxu0 0
    %451 = vmatpush1.bf16.msra.mxu0 %v386
    %452 = vmatprep.subr.bf16.mxu0 0
    %453 = vmatpush1.bf16.msra.mxu0 %v387
    %454 = vmatprep.subr.bf16.mxu0 0
    %455 = vmatpush1.bf16.msra.mxu0 %v388
    %456 = vmatprep.subr.bf16.mxu0 0
    %457 = vmatpush1.bf16.msra.mxu0 %v389
    %458 = vmatprep.subr.bf16.mxu0 0
    %459 = vmatpush1.bf16.msra.mxu0 %v390
    %460 = vmatprep.subr.bf16.mxu0 0
    %461 = vmatpush1.bf16.msra.mxu0 %v391
    %462 = vmatprep.subr.bf16.mxu0 0
    %463 = vmatpush1.bf16.msra.mxu0 %v392
    %464 = vmatprep.subr.bf16.mxu0 0
    %465 = vmatpush1.bf16.msra.mxu0 %v393
    %466 = vmatprep.subr.bf16.mxu0 0
    %467 = vmatpush1.bf16.msra.mxu0 0
    %468 = vmatprep.subr.bf16.mxu0 0
    %469 = vmatpush1.bf16.msra.mxu0 0
    %470 = vmatprep.subr.bf16.mxu0 0
    %471 = vmatpush1.bf16.msra.mxu0 0
    %472 = vmatprep.subr.bf16.mxu0 0
    %473 = vmatpush1.bf16.msra.mxu0 0
    %474 = vmatprep.subr.bf16.mxu0 0
    %475 = vmatpush1.bf16.msra.mxu0 0
    %476 = vmatprep.subr.bf16.mxu0 0
    %477 = vmatpush1.bf16.msra.mxu0 0
    %478 = vmatprep.subr.bf16.mxu0 0
    %479 = vmatpush1.bf16.msra.mxu0 0
    %480 = vmatprep.subr.bf16.mxu0 0
    %481 = vmatpush1.bf16.msra.mxu0 0
    %482 = vmatprep.mubr.bf16.mxu0 0
    %483 = vmatmul.mubr.bf16.gmra.mrb[0].mxu0 %v449
    %v484 = vpop.f32.mrb[0].mxu0
    %v485 = vadd.f32 %v352, %v484
    %v486 = vpop.f32.mrb[0].mxu0
    %v487 = vpop.f32.mrb[0].mxu0
    %v488 = vpop.f32.mrb[0].mxu0
    %489 = vdwg.mxu0
    %491 = vrot.lane.b32.xlu0 %v485, 85
    %v492 = vpop.permute.xlu0 %491
    %vm494 = vcmask 730792
    %495 = vst.msk [vmem:[#allocation2] sm:$0x3] %vm494, %v492
    %v496 = vld [vmem:[%s0 + $0xe] sm:$0x3]
    %v497 = vpack.c.bf16 %v496, %v496
    %498 = vmatprep.subr.bf16.mxu0 0
    %499 = vmatpush1.bf16.msra.mxu0 %v386
    %500 = vmatprep.subr.bf16.mxu0 0
    %501 = vmatpush1.bf16.msra.mxu0 %v387
    %502 = vmatprep.subr.bf16.mxu0 0
    %503 = vmatpush1.bf16.msra.mxu0 %v388
    %504 = vmatprep.subr.bf16.mxu0 0
    %505 = vmatpush1.bf16.msra.mxu0 %v389
    %506 = vmatprep.subr.bf16.mxu0 0
    %507 = vmatpush1.bf16.msra.mxu0 %v390
    %508 = vmatprep.subr.bf16.mxu0 0
    %509 = vmatpush1.bf16.msra.mxu0 %v391
    %510 = vmatprep.subr.bf16.mxu0 0
    %511 = vmatpush1.bf16.msra.mxu0 %v392
    %512 = vmatprep.subr.bf16.mxu0 0
    %513 = vmatpush1.bf16.msra.mxu0 %v393
    %514 = vmatprep.subr.bf16.mxu0 0
    %515 = vmatpush1.bf16.msra.mxu0 0
    %516 = vmatprep.subr.bf16.mxu0 0
    %517 = vmatpush1.bf16.msra.mxu0 0
    %518 = vmatprep.subr.bf16.mxu0 0
    %519 = vmatpush1.bf16.msra.mxu0 0
    %520 = vmatprep.subr.bf16.mxu0 0
    %521 = vmatpush1.bf16.msra.mxu0 0
    %522 = vmatprep.subr.bf16.mxu0 0
    %523 = vmatpush1.bf16.msra.mxu0 0
    %524 = vmatprep.subr.bf16.mxu0 0
    %525 = vmatpush1.bf16.msra.mxu0 0
    %526 = vmatprep.subr.bf16.mxu0 0
    %527 = vmatpush1.bf16.msra.mxu0 0
    %528 = vmatprep.subr.bf16.mxu0 0
    %529 = vmatpush1.bf16.msra.mxu0 0
    %530 = vmatprep.mubr.bf16.mxu0 0
    %531 = vmatmul.mubr.bf16.gmra.mrb[0].mxu0 %v497
    %v532 = vpop.f32.mrb[0].mxu0
    %v533 = vadd.f32 %v352, %v532
    %v534 = vpop.f32.mrb[0].mxu0
    %v535 = vpop.f32.mrb[0].mxu0
    %v536 = vpop.f32.mrb[0].mxu0
    %537 = vdwg.mxu0
    %539 = vrot.lane.b32.xlu0 %v533, 90
    %v540 = vpop.permute.xlu0 %539
    %vm542 = vcmask 771792
    %543 = vst.msk [vmem:[#allocation2] sm:$0x3] %vm542, %v540
    %v544 = vld [vmem:[%s0 + $0x10] sm:$0x3]
    %v545 = vpack.c.bf16 %v544, %v544
    %546 = vmatprep.subr.bf16.mxu0 0
    %547 = vmatpush1.bf16.msra.mxu0 %v386
    %548 = vmatprep.subr.bf16.mxu0 0
    %549 = vmatpush1.bf16.msra.mxu0 %v387
    %550 = vmatprep.subr.bf16.mxu0 0
    %551 = vmatpush1.bf16.msra.mxu0 %v388
    %552 = vmatprep.subr.bf16.mxu0 0
    %553 = vmatpush1.bf16.msra.mxu0 %v389
    %554 = vmatprep.subr.bf16.mxu0 0
    %555 = vmatpush1.bf16.msra.mxu0 %v390
    %556 = vmatprep.subr.bf16.mxu0 0
    %557 = vmatpush1.bf16.msra.mxu0 %v391
    %558 = vmatprep.subr.bf16.mxu0 0
    %559 = vmatpush1.bf16.msra.mxu0 %v392
    %560 = vmatprep.subr.bf16.mxu0 0
    %561 = vmatpush1.bf16.msra.mxu0 %v393
    %562 = vmatprep.subr.bf16.mxu0 0
    %563 = vmatpush1.bf16.msra.mxu0 0
    %564 = vmatprep.subr.bf16.mxu0 0
    %565 = vmatpush1.bf16.msra.mxu0 0
    %566 = vmatprep.subr.bf16.mxu0 0
    %567 = vmatpush1.bf16.msra.mxu0 0
    %568 = vmatprep.subr.bf16.mxu0 0
    %569 = vmatpush1.bf16.msra.mxu0 0
    %570 = vmatprep.subr.bf16.mxu0 0
    %571 = vmatpush1.bf16.msra.mxu0 0
    %572 = vmatprep.subr.bf16.mxu0 0
    %573 = vmatpush1.bf16.msra.mxu0 0
    %574 = vmatprep.subr.bf16.mxu0 0
    %575 = vmatpush1.bf16.msra.mxu0 0
    %576 = vmatprep.subr.bf16.mxu0 0
    %577 = vmatpush1.bf16.msra.mxu0 0
    %578 = vmatprep.mubr.bf16.mxu0 0
    %579 = vmatmul.mubr.bf16.gmra.mrb[0].mxu0 %v545
    %v580 = vpop.f32.mrb[0].mxu0
    %v581 = vadd.f32 %v352, %v580
    %v582 = vpop.f32.mrb[0].mxu0
    %v583 = vpop.f32.mrb[0].mxu0
    %v584 = vpop.f32.mrb[0].mxu0
    %585 = vdwg.mxu0
    %587 = vrot.lane.b32.xlu0 %v581, 95
    %v588 = vpop.permute.xlu0 %587
    %vm590 = vcmask 812792
    %591 = vst.msk [vmem:[#allocation2] sm:$0x3] %vm590, %v588
    // Predicated region
    $region22: #{debedder_forward.1} parent=1 // pred_check
      _
    $region23: #{debedder_forward.1} parent=1 // pred_check_branch
      %593 = sbr.rel (0) target = $region25
    $region24: #{debedder_forward.1} parent=1 // pred_region
      %s595 = ssub.s32 32, 32
      %596 = vsyncadd [#allocation3], %s595
      %s598 = sshll.u32 [#allocation2], 4
      %s599 = int_to_ptr.vmem [resolvable:$true] %s598
      %601 = dma.vmem_to_hbm [thread:$0]  %s599, 32, %s5, [#allocation3]
    $region25: #{debedder_forward.1} parent=1 // pred_fallthru
      _
    // Predicated region
    $region26: #{debedder_forward.1} parent=1 // pred_check
      _
    $region27: #{debedder_forward.1} parent=1 // pred_check_branch
      %603 = sbr.rel (0) target = $region29
    $region28: #{debedder_forward.1} parent=1 // pred_region
      %604 = dma.done [#allocation3], 32
    $region29: #{debedder_forward.1} parent=1 // pred_fallthru
      _
    %605 = vsyncpa [#allocation3], 1

</llo_original>
